<compile_context>
chip_gen: v6e
topology: v6e:2x2x1
jax: 0.10.0
libtpu: 0.0.40
codegen_flags: <defaults>
</compile_context>

<pallas_src>
import jax
import jax.numpy as jnp
from jax.experimental import pallas as pl
from jax.experimental.pallas import tpu as pltpu


def _leaky_relu(x, slope=0.01):
    # slope < 1  =>  max(x, slope*x) == leaky_relu(x)
    return jnp.maximum(x, slope * x)


def critic_kernel(state_ref, action_ref,
                  w1_ref, w2x_ref, w2a_ref, w3_ref, w4_ref,
                  vecs_ref,          # [5, H] f32: b1, gamma, beta, b2, b3
                  b4_ref,            # [1, 1] f32 in SMEM
                  out_ref):          # [1, TB] f32 (lane-dense: batch on lanes)
    f32 = jnp.float32
    dt = w1_ref.dtype          # matmul operand dtype (bf16 or f32); stats in f32

    b1 = vecs_ref[0:1, :]
    g = vecs_ref[1:2, :]
    beta = vecs_ref[2:3, :]
    b2 = vecs_ref[3:4, :]
    b3 = vecs_ref[4:5, :]

    # fcs1: [TB, S] @ [S, H] + b1, f32 accumulation.
    x = jnp.dot(state_ref[...].astype(dt), w1_ref[...],
                preferred_element_type=f32) + b1

    # LayerNorm over the feature axis (eps = 1e-5, biased variance), one pass:
    # two independent lane reductions, var = E[x^2] - mean^2 (fine post-matmul).
    inv_h = 1.0 / x.shape[-1]
    s1 = jnp.sum(x, axis=-1, keepdims=True)
    s2 = jnp.sum(x * x, axis=-1, keepdims=True)
    mean = s1 * inv_h
    var = jnp.maximum(s2 * inv_h - mean * mean, 0.0)
    x = (x - mean) * jax.lax.rsqrt(var + 1e-5)
    x = _leaky_relu(x * g + beta)

    # fc2: concat([x, action]) folded as two matmuls against the split W2 halves
    # (no VMEM scratch round trip; the action push is independent of layer 1).
    h = jnp.dot(x.astype(dt), w2x_ref[...], preferred_element_type=f32)
    h = h + jnp.dot(action_ref[...].astype(dt), w2a_ref[...],
                    preferred_element_type=f32)
    h = _leaky_relu(h + b2)

    # fc3 (weight already spectrally normalized in the wrapper).
    h = _leaky_relu(jnp.dot(h.astype(dt), w3_ref[...],
                            preferred_element_type=f32) + b3)

    # fc4 head (out_features = 1): VPU multiply + lane reduction instead of a
    # 1-lane MXU matmul; store lane-dense as a [1, TB] row.
    q = jnp.sum(h * w4_ref[...], axis=-1) + b4_ref[0, 0]      # [TB] f32
    out_ref[...] = q[None, :].astype(out_ref.dtype)


def critic_forward(state, action, params, *, block_b=None,
                   matmul_dtype=jnp.bfloat16, weight_buffering=2):
    B, S = state.shape
    A = action.shape[1]
    H = params["w1"].shape[1]

    if block_b is None:
        # Single grid step over the whole batch, rounded to sublane granularity.
        # For very large B choose an explicit block_b >= 128 / 256 instead.
        block_b = max(8, pl.cdiv(B, 8) * 8)

    n_tiles = pl.cdiv(B, block_b)
    if n_tiles > 1:
        # Lane-dense [1, block_b] output tiles need 128-lane alignment.
        assert block_b % 128 == 0, "use block_b % 128 == 0 (or block_b=None)"

    Bp = n_tiles * block_b
    if Bp != B:
        state = jnp.pad(state, ((0, Bp - B), (0, 0)))
        action = jnp.pad(action, ((0, Bp - B), (0, 0)))

    # Pre-cast / pre-pack weights ONCE in the wrapper (outside the grid).
    w1 = params["w1"].astype(matmul_dtype)
    w2x = params["w2"][:H].astype(matmul_dtype)      # x-half of combined fc2
    w2a = params["w2"][H:].astype(matmul_dtype)      # action-half of fc2
    w3 = params["w3n"].astype(matmul_dtype)          # spectrally normalized
    w4 = params["w4"].reshape(1, H).astype(jnp.float32)   # VPU head: keep f32
    vecs = jnp.concatenate(
        [params["b1"], params["gamma"], params["beta"], params["b2"], params["b3"]],
        axis=0).astype(jnp.float32)                   # [5, H]
    b4 = params["b4"].reshape(1, 1).astype(jnp.float32)

    batch_map = lambda i: (i, 0)
    out_map = lambda i: (0, i)        # batch along the 128-lane axis
    resident = lambda *_: (0, 0)      # same block every step -> stays in VMEM

    # Optionally single-buffer the never-changing weight blocks (v7x, large H):
    # default double-buffering would 2x their resident VMEM for zero benefit.
    wkw = {} if weight_buffering == 2 else {"pipeline_mode": pl.Buffered(weight_buffering)}

    out = pl.pallas_call(
        critic_kernel,
        out_shape=jax.ShapeDtypeStruct((1, Bp), jnp.float32),
        grid_spec=pltpu.PrefetchScalarGridSpec(
            num_scalar_prefetch=0,
            grid=(n_tiles,),
            in_specs=[
                pl.BlockSpec((block_b, S), batch_map),          # state tile
                pl.BlockSpec((block_b, A), batch_map),          # action tile
                pl.BlockSpec((S, H), resident, **wkw),          # W1
                pl.BlockSpec((H, H), resident, **wkw),          # W2_x
                pl.BlockSpec((A, H), resident, **wkw),          # W2_a
                pl.BlockSpec((H, H), resident, **wkw),          # W3 / sigma
                pl.BlockSpec((1, H), resident, **wkw),          # W4 row
                pl.BlockSpec((5, H), resident, **wkw),          # packed row vecs
                pl.BlockSpec(memory_space=pltpu.MemorySpace.SMEM),  # b4 scalar
            ],
            out_specs=pl.BlockSpec((1, block_b), out_map),
        ),
        compiler_params=pltpu.CompilerParams(
            dimension_semantics=(("parallel",) if n_tiles > 1 else ("arbitrary",)),
            vmem_limit_bytes=32 << 20,                # valid on v7x's 64 MiB VMEM
        ),
    )(state, action, w1, w2x, w2a, w3, w4, vecs, b4)

    return out[0, :B].reshape(B, 1)


def make_params(key, state_size, action_size, hidden_size):
    """Deterministic synthetic parameters (PyTorch-ish uniform fan-in init)."""
    ks = jax.random.split(key, 8)

    def lin(k, fan_in, fan_out):
        bound = 1.0 / jnp.sqrt(fan_in)
        kw, kb = jax.random.split(k)
        w = jax.random.uniform(kw, (fan_in, fan_out), jnp.float32, -bound, bound)
        b = jax.random.uniform(kb, (1, fan_out), jnp.float32, -bound, bound)
        return w, b

    w1, b1 = lin(ks[0], state_size, hidden_size)
    gamma = jnp.ones((1, hidden_size), jnp.float32)
    beta = jnp.zeros((1, hidden_size), jnp.float32)

    w2, b2 = lin(ks[1], hidden_size + action_size, hidden_size)

    w3, b3 = lin(ks[2], hidden_size, hidden_size)
    # spectral_norm: divide the weight by its largest singular value (power iter).
    u = jax.random.normal(ks[3], (hidden_size,), jnp.float32)

    def piter(_, u):
        v = w3.T @ u
        v = v / (jnp.linalg.norm(v) + 1e-12)
        u = w3 @ v
        u = u / (jnp.linalg.norm(u) + 1e-12)
        return u

    u = jax.lax.fori_loop(0, 30, piter, u)
    v = w3.T @ u
    v = v / (jnp.linalg.norm(v) + 1e-12)
    sigma = u @ (w3 @ v)
    w3n = w3 / sigma

    w4, b4 = lin(ks[4], hidden_size, 1)

    return dict(w1=w1, b1=b1, gamma=gamma, beta=beta,
                w2=w2, b2=b2, w3n=w3n, b3=b3, w4=w4, b4=b4)


def reference_forward(state, action, p):
    x = state @ p["w1"] + p["b1"]
    mean = x.mean(-1, keepdims=True)
    var = ((x - mean) ** 2).mean(-1, keepdims=True)
    x = (x - mean) / jnp.sqrt(var + 1e-5) * p["gamma"] + p["beta"]
    x = _leaky_relu(x)
    xa = jnp.concatenate([x, action], axis=1)
    h = _leaky_relu(xa @ p["w2"] + p["b2"])
    h = _leaky_relu(h @ p["w3n"] + p["b3"])
    return h @ p["w4"] + p["b4"]


if __name__ == "__main__":
    STATE, ACTION, HIDDEN = 16, 8, 32
    BATCH = 64

    key = jax.random.PRNGKey(0)
    kp, ks, ka = jax.random.split(key, 3)
    params = make_params(kp, STATE, ACTION, HIDDEN)
    state = jax.random.normal(ks, (BATCH, STATE), jnp.float32)
    action = jax.random.normal(ka, (BATCH, ACTION), jnp.float32)

    q_ref = reference_forward(state, action, params)

    # Default path: single grid step over the whole batch, bf16 MXU operands,
    # f32 stats/accumulation.  Loose tolerance accounts for the bf16 operands.
    q = critic_forward(state, action, params)
    jax.block_until_ready(q)
    assert q.shape == (BATCH, 1)
    assert jnp.allclose(q, q_ref, atol=5e-2, rtol=5e-2), (q, q_ref)

    # f32 operand path: tight correctness check against the pure-JAX reference.
    q_f32 = critic_forward(state, action, params, matmul_dtype=jnp.float32)
    jax.block_until_ready(q_f32)
    assert jnp.allclose(q_f32, q_ref, atol=1e-4, rtol=1e-4), (q_f32, q_ref)

    print("KERNEL_OK")
</pallas_src>

<mosaic_0001>
module attributes {stable_mosaic.version = 11 : i64} {
  func.func @critic_kernel(%arg0: i32, %arg1: memref<64x16xf32, #tpu.memory_space<vmem>>, %arg2: memref<64x8xf32, #tpu.memory_space<vmem>>, %arg3: memref<16x32xbf16, #tpu.memory_space<vmem>>, %arg4: memref<32x32xbf16, #tpu.memory_space<vmem>>, %arg5: memref<8x32xbf16, #tpu.memory_space<vmem>>, %arg6: memref<32x32xbf16, #tpu.memory_space<vmem>>, %arg7: memref<1x32xf32, #tpu.memory_space<vmem>>, %arg8: memref<5x32xf32, #tpu.memory_space<vmem>>, %arg9: memref<1x1xf32, #tpu.memory_space<smem>>, %arg10: memref<1x64xf32, #tpu.memory_space<vmem>>) attributes {dimension_semantics = [#tpu.dimension_semantics<arbitrary>], iteration_bounds = array<i64: 1>, scalar_prefetch = 0 : i64, scratch_operands = 0 : i64, tpu.core_type = #tpu.core_type<tc>, window_params = [{transform_indices = @transform_0, window_bounds = array<i64: 64, 16>}, {transform_indices = @transform_1, window_bounds = array<i64: 64, 8>}, {pipeline_mode = #tpu.pipeline_mode<synchronous>, transform_indices = @transform_2, window_bounds = array<i64: 16, 32>}, {pipeline_mode = #tpu.pipeline_mode<synchronous>, transform_indices = @transform_3, window_bounds = array<i64: 32, 32>}, {pipeline_mode = #tpu.pipeline_mode<synchronous>, transform_indices = @transform_4, window_bounds = array<i64: 8, 32>}, {pipeline_mode = #tpu.pipeline_mode<synchronous>, transform_indices = @transform_5, window_bounds = array<i64: 32, 32>}, {pipeline_mode = #tpu.pipeline_mode<synchronous>, transform_indices = @transform_6, window_bounds = array<i64: 1, 32>}, {pipeline_mode = #tpu.pipeline_mode<synchronous>, transform_indices = @transform_7, window_bounds = array<i64: 5, 32>}, {transform_indices = @transform_8, window_bounds = array<i64: 1, 1>}, {transform_indices = @transform_9, window_bounds = array<i64: 1, 64>}]} {
    %c0 = arith.constant 0 : index
    %c0_0 = arith.constant 0 : index
    %0 = vector.load %arg8[%c0, %c0_0] : memref<5x32xf32, #tpu.memory_space<vmem>>, vector<1x32xf32>
    %c1 = arith.constant 1 : index
    %c0_1 = arith.constant 0 : index
    %1 = vector.load %arg8[%c1, %c0_1] : memref<5x32xf32, #tpu.memory_space<vmem>>, vector<1x32xf32>
    %c2 = arith.constant 2 : index
    %c0_2 = arith.constant 0 : index
    %2 = vector.load %arg8[%c2, %c0_2] : memref<5x32xf32, #tpu.memory_space<vmem>>, vector<1x32xf32>
    %c3 = arith.constant 3 : index
    %c0_3 = arith.constant 0 : index
    %3 = vector.load %arg8[%c3, %c0_3] : memref<5x32xf32, #tpu.memory_space<vmem>>, vector<1x32xf32>
    %c4 = arith.constant 4 : index
    %c0_4 = arith.constant 0 : index
    %4 = vector.load %arg8[%c4, %c0_4] : memref<5x32xf32, #tpu.memory_space<vmem>>, vector<1x32xf32>
    %c0_5 = arith.constant 0 : index
    %c0_6 = arith.constant 0 : index
    %5 = vector.load %arg1[%c0_5, %c0_6] : memref<64x16xf32, #tpu.memory_space<vmem>>, vector<64x16xf32>
    %6 = arith.truncf %5 : vector<64x16xf32> to vector<64x16xbf16>
    %c0_7 = arith.constant 0 : index
    %c0_8 = arith.constant 0 : index
    %7 = vector.load %arg3[%c0_7, %c0_8] : memref<16x32xbf16, #tpu.memory_space<vmem>>, vector<16x32xbf16>
    %cst = arith.constant dense<0.000000e+00> : vector<64x32xf32>
    %8 = tpu.matmul %6, %7, %cst {dimension_numbers = #tpu.dot_dimension_numbers<[1], [0], [0], [1], [0, 0, 1, 1], [], []>} : vector<64x16xbf16>, vector<16x32xbf16>, vector<64x32xf32> -> vector<64x32xf32>
    %9 = vector.broadcast %0 : vector<1x32xf32> to vector<64x32xf32>
    %10 = arith.addf %8, %9 : vector<64x32xf32>
    %cst_9 = arith.constant dense<0.000000e+00> : vector<64xf32>
    %11 = vector.multi_reduction <add>, %10, %cst_9 [1] : vector<64x32xf32> to vector<64xf32>
    %12 = vector.shape_cast %11 : vector<64xf32> to vector<64x1xf32>
    %13 = arith.mulf %10, %10 : vector<64x32xf32>
    %cst_10 = arith.constant dense<0.000000e+00> : vector<64xf32>
    %14 = vector.multi_reduction <add>, %13, %cst_10 [1] : vector<64x32xf32> to vector<64xf32>
    %15 = vector.shape_cast %14 : vector<64xf32> to vector<64x1xf32>
    %cst_11 = arith.constant 3.125000e-02 : f32
    %16 = vector.broadcast %cst_11 : f32 to vector<64x1xf32>
    %17 = arith.mulf %12, %16 : vector<64x1xf32>
    %cst_12 = arith.constant 3.125000e-02 : f32
    %18 = vector.broadcast %cst_12 : f32 to vector<64x1xf32>
    %19 = arith.mulf %15, %18 : vector<64x1xf32>
    %20 = arith.mulf %17, %17 : vector<64x1xf32>
    %21 = arith.subf %19, %20 : vector<64x1xf32>
    %cst_13 = arith.constant 0.000000e+00 : f32
    %22 = vector.broadcast %cst_13 : f32 to vector<64x1xf32>
    %23 = arith.maximumf %21, %22 : vector<64x1xf32>
    %24 = vector.broadcast %17 : vector<64x1xf32> to vector<64x32xf32>
    %25 = arith.subf %10, %24 : vector<64x32xf32>
    %cst_14 = arith.constant 9.99999974E-6 : f32
    %26 = vector.broadcast %cst_14 : f32 to vector<64x1xf32>
    %27 = arith.addf %23, %26 : vector<64x1xf32>
    %28 = math.rsqrt %27 : vector<64x1xf32>
    %29 = vector.broadcast %28 : vector<64x1xf32> to vector<64x32xf32>
    %30 = arith.mulf %25, %29 : vector<64x32xf32>
    %31 = vector.broadcast %1 : vector<1x32xf32> to vector<64x32xf32>
    %32 = arith.mulf %30, %31 : vector<64x32xf32>
    %33 = vector.broadcast %2 : vector<1x32xf32> to vector<64x32xf32>
    %34 = arith.addf %32, %33 : vector<64x32xf32>
    %cst_15 = arith.constant 0.00999999977 : f32
    %35 = vector.broadcast %cst_15 : f32 to vector<64x32xf32>
    %36 = arith.mulf %35, %34 : vector<64x32xf32>
    %37 = arith.maximumf %34, %36 : vector<64x32xf32>
    %38 = arith.truncf %37 : vector<64x32xf32> to vector<64x32xbf16>
    %c0_16 = arith.constant 0 : index
    %c0_17 = arith.constant 0 : index
    %39 = vector.load %arg4[%c0_16, %c0_17] : memref<32x32xbf16, #tpu.memory_space<vmem>>, vector<32x32xbf16>
    %cst_18 = arith.constant dense<0.000000e+00> : vector<64x32xf32>
    %40 = tpu.matmul %38, %39, %cst_18 {dimension_numbers = #tpu.dot_dimension_numbers<[1], [0], [0], [1], [0, 0, 1, 1], [], []>} : vector<64x32xbf16>, vector<32x32xbf16>, vector<64x32xf32> -> vector<64x32xf32>
    %c0_19 = arith.constant 0 : index
    %c0_20 = arith.constant 0 : index
    %41 = vector.load %arg2[%c0_19, %c0_20] : memref<64x8xf32, #tpu.memory_space<vmem>>, vector<64x8xf32>
    %42 = arith.truncf %41 : vector<64x8xf32> to vector<64x8xbf16>
    %c0_21 = arith.constant 0 : index
    %c0_22 = arith.constant 0 : index
    %43 = vector.load %arg5[%c0_21, %c0_22] : memref<8x32xbf16, #tpu.memory_space<vmem>>, vector<8x32xbf16>
    %cst_23 = arith.constant dense<0.000000e+00> : vector<64x32xf32>
    %44 = tpu.matmul %42, %43, %cst_23 {dimension_numbers = #tpu.dot_dimension_numbers<[1], [0], [0], [1], [0, 0, 1, 1], [], []>} : vector<64x8xbf16>, vector<8x32xbf16>, vector<64x32xf32> -> vector<64x32xf32>
    %45 = arith.addf %40, %44 : vector<64x32xf32>
    %46 = vector.broadcast %3 : vector<1x32xf32> to vector<64x32xf32>
    %47 = arith.addf %45, %46 : vector<64x32xf32>
    %cst_24 = arith.constant 0.00999999977 : f32
    %48 = vector.broadcast %cst_24 : f32 to vector<64x32xf32>
    %49 = arith.mulf %48, %47 : vector<64x32xf32>
    %50 = arith.maximumf %47, %49 : vector<64x32xf32>
    %51 = arith.truncf %50 : vector<64x32xf32> to vector<64x32xbf16>
    %c0_25 = arith.constant 0 : index
    %c0_26 = arith.constant 0 : index
    %52 = vector.load %arg6[%c0_25, %c0_26] : memref<32x32xbf16, #tpu.memory_space<vmem>>, vector<32x32xbf16>
    %cst_27 = arith.constant dense<0.000000e+00> : vector<64x32xf32>
    %53 = tpu.matmul %51, %52, %cst_27 {dimension_numbers = #tpu.dot_dimension_numbers<[1], [0], [0], [1], [0, 0, 1, 1], [], []>} : vector<64x32xbf16>, vector<32x32xbf16>, vector<64x32xf32> -> vector<64x32xf32>
    %54 = vector.broadcast %4 : vector<1x32xf32> to vector<64x32xf32>
    %55 = arith.addf %53, %54 : vector<64x32xf32>
    %cst_28 = arith.constant 0.00999999977 : f32
    %56 = vector.broadcast %cst_28 : f32 to vector<64x32xf32>
    %57 = arith.mulf %56, %55 : vector<64x32xf32>
    %58 = arith.maximumf %55, %57 : vector<64x32xf32>
    %c0_29 = arith.constant 0 : index
    %c0_30 = arith.constant 0 : index
    %59 = vector.load %arg7[%c0_29, %c0_30] : memref<1x32xf32, #tpu.memory_space<vmem>>, vector<1x32xf32>
    %60 = vector.broadcast %59 : vector<1x32xf32> to vector<64x32xf32>
    %61 = arith.mulf %58, %60 : vector<64x32xf32>
    %cst_31 = arith.constant dense<0.000000e+00> : vector<64xf32>
    %62 = vector.multi_reduction <add>, %61, %cst_31 [1] : vector<64x32xf32> to vector<64xf32>
    %c0_32 = arith.constant 0 : index
    %c0_33 = arith.constant 0 : index
    %63 = memref.load %arg9[%c0_32, %c0_33] : memref<1x1xf32, #tpu.memory_space<smem>>
    %64 = vector.broadcast %63 : f32 to vector<64xf32>
    %65 = arith.addf %62, %64 : vector<64xf32>
    %66 = vector.shape_cast %65 : vector<64xf32> to vector<1x64xf32>
    %c0_34 = arith.constant 0 : index
    %c0_35 = arith.constant 0 : index
    %67 = vector.load %arg10[%c0_34, %c0_35] : memref<1x64xf32, #tpu.memory_space<vmem>>, vector<1x64xf32>
    tpu.vector_store %arg10[%c0_34, %c0_35], %66 {strides = array<i32>} : memref<1x64xf32, #tpu.memory_space<vmem>>, vector<1x64xf32>,
    return
  }
  func.func @transform_0(%arg0: i32) -> (i32, i32) {
    %c0_i32 = arith.constant 0 : i32
    %c0_i32_0 = arith.constant 0 : i32
    return %arg0, %c0_i32 : i32, i32
  }
  func.func @transform_1(%arg0: i32) -> (i32, i32) {
    %c0_i32 = arith.constant 0 : i32
    %c0_i32_0 = arith.constant 0 : i32
    return %arg0, %c0_i32 : i32, i32
  }
  func.func @transform_2(%arg0: i32) -> (i32, i32) {
    %c0_i32 = arith.constant 0 : i32
    %c0_i32_0 = arith.constant 0 : i32
    %c0_i32_1 = arith.constant 0 : i32
    return %c0_i32, %c0_i32_0 : i32, i32
  }
  func.func @transform_3(%arg0: i32) -> (i32, i32) {
    %c0_i32 = arith.constant 0 : i32
    %c0_i32_0 = arith.constant 0 : i32
    %c0_i32_1 = arith.constant 0 : i32
    return %c0_i32, %c0_i32_0 : i32, i32
  }
  func.func @transform_4(%arg0: i32) -> (i32, i32) {
    %c0_i32 = arith.constant 0 : i32
    %c0_i32_0 = arith.constant 0 : i32
    %c0_i32_1 = arith.constant 0 : i32
    return %c0_i32, %c0_i32_0 : i32, i32
  }
  func.func @transform_5(%arg0: i32) -> (i32, i32) {
    %c0_i32 = arith.constant 0 : i32
    %c0_i32_0 = arith.constant 0 : i32
    %c0_i32_1 = arith.constant 0 : i32
    return %c0_i32, %c0_i32_0 : i32, i32
  }
  func.func @transform_6(%arg0: i32) -> (i32, i32) {
    %c0_i32 = arith.constant 0 : i32
    %c0_i32_0 = arith.constant 0 : i32
    %c0_i32_1 = arith.constant 0 : i32
    return %c0_i32, %c0_i32_0 : i32, i32
  }
  func.func @transform_7(%arg0: i32) -> (i32, i32) {
    %c0_i32 = arith.constant 0 : i32
    %c0_i32_0 = arith.constant 0 : i32
    %c0_i32_1 = arith.constant 0 : i32
    return %c0_i32, %c0_i32_0 : i32, i32
  }
  func.func @transform_8(%arg0: i32) -> (i32, i32) {
    %c0_i32 = arith.constant 0 : i32
    %c0_i32_0 = arith.constant 0 : i32
    %c0_i32_1 = arith.constant 0 : i32
    return %c0_i32, %c0_i32_0 : i32, i32
  }
  func.func @transform_9(%arg0: i32) -> (i32, i32) {
    %c0_i32 = arith.constant 0 : i32
    %c0_i32_0 = arith.constant 0 : i32
    return %c0_i32, %arg0 : i32, i32
  }
}

</mosaic_0001>

<llo_original>
// kernel: tpu_custom_call.1
$region0: #{tpu_custom_call.1}
  #allocation0 [shape = 'u32[]', space=smem, size = 0x4, offset = 0x4, fixed_abs, tag = 'smem constant byte address 0x4 - core index']
  #allocation1 [shape = 'u32[144,128]{1,0:T(1,128)}', space=vmem, size = 0x12000, scoped, tag = 'internal scratch']
  #allocation2 [shape = 'f32[1,1]{1,0:T(1,128)S(6)}', space=smem, size = 0x200, scoped, tag = 'scoped memory for tpu_custom_call.1']
  %s0 = inlined_call_operand.vmem [shape: f32[64,16], index: 0, kind: input, shape index: {}]
  %s1 = inlined_call_operand.vmem [shape: f32[64,8], index: 1, kind: input, shape index: {}]
  %s2 = inlined_call_operand.vmem [shape: bf16[16,32], index: 2, kind: input, shape index: {}]
  %s3 = inlined_call_operand.vmem [shape: bf16[32,32], index: 3, kind: input, shape index: {}]
  %s4 = inlined_call_operand.vmem [shape: bf16[8,32], index: 4, kind: input, shape index: {}]
  %s5 = inlined_call_operand.vmem [shape: bf16[32,32], index: 5, kind: input, shape index: {}]
  %s6 = inlined_call_operand.vmem [shape: f32[1,32], index: 6, kind: input, shape index: {}]
  %s7 = inlined_call_operand.vmem [shape: f32[5,32], index: 7, kind: input, shape index: {}]
  %s8 = inlined_call_operand.<no memory space> [shape: f32[1,1], index: 8, kind: input, shape index: {}]
  %s9 = inlined_call_operand.hbm [shape: f32[1,64], index: 9, kind: output, shape index: {}]
  %s10 = sld [smem:[#allocation0]]
  $region46: #{tpu_custom_call.1} parent=0
    _
  %s12 = ssub.s32 1, %s10
  %s13 = scalar_select 0, %s12, %s10
  %14 = sst [smem:[#allocation2]] %s8
  $region1: #{tpu_custom_call.1} parent=0
    #allocation3 [shape = 'u8[512]{0}', space=vmem, size = 0x400, scoped, tag = 'output window, operand 0, single buffered']
    #allocation4 [shape = 's32[1]{0}', space=sflag, size = 0x4, scoped, tag = 'scoped memory for tpu_custom_call.1']
    %15 = vsyncpa [#allocation4], 0
    // Predicated region
    $region2: #{tpu_custom_call.1} parent=1 // pred_check
      _
    $region3: #{tpu_custom_call.1} parent=1 // pred_check_branch
      %17 = sbr.rel (0) target = $region5
    $region4: #{tpu_custom_call.1} parent=1 // pred_region
      _
    $region5: #{tpu_custom_call.1} parent=1 // pred_fallthru
      _
    // Predicated region
    $region6: #{tpu_custom_call.1} parent=1 // pred_check
      _
    $region7: #{tpu_custom_call.1} parent=1 // pred_check_branch
      %19 = sbr.rel (0) target = $region9
    $region8: #{tpu_custom_call.1} parent=1 // pred_region
      _
    $region9: #{tpu_custom_call.1} parent=1 // pred_fallthru
      _
    // Predicated region
    $region10: #{tpu_custom_call.1} parent=1 // pred_check
      _
    $region11: #{tpu_custom_call.1} parent=1 // pred_check_branch
      %21 = sbr.rel (0) target = $region13
    $region12: #{tpu_custom_call.1} parent=1 // pred_region
      _
    $region13: #{tpu_custom_call.1} parent=1 // pred_fallthru
      _
    // Predicated region
    $region14: #{tpu_custom_call.1} parent=1 // pred_check
      _
    $region15: #{tpu_custom_call.1} parent=1 // pred_check_branch
      %23 = sbr.rel (0) target = $region17
    $region16: #{tpu_custom_call.1} parent=1 // pred_region
      _
    $region17: #{tpu_custom_call.1} parent=1 // pred_fallthru
      _
    // Predicated region
    $region18: #{tpu_custom_call.1} parent=1 // pred_check
      _
    $region19: #{tpu_custom_call.1} parent=1 // pred_check_branch
      %25 = sbr.rel (0) target = $region21
    $region20: #{tpu_custom_call.1} parent=1 // pred_region
      _
    $region21: #{tpu_custom_call.1} parent=1 // pred_fallthru
      _
    // Predicated region
    $region22: #{tpu_custom_call.1} parent=1 // pred_check
      _
    $region23: #{tpu_custom_call.1} parent=1 // pred_check_branch
      %27 = sbr.rel (0) target = $region25
    $region24: #{tpu_custom_call.1} parent=1 // pred_region
      _
    $region25: #{tpu_custom_call.1} parent=1 // pred_fallthru
      _
    // Predicated region
    $region26: #{tpu_custom_call.1} parent=1 // pred_check
      _
    $region27: #{tpu_custom_call.1} parent=1 // pred_check_branch
      %29 = sbr.rel (0) target = $region29
    $region28: #{tpu_custom_call.1} parent=1 // pred_region
      _
    $region29: #{tpu_custom_call.1} parent=1 // pred_fallthru
      _
    // Predicated region
    $region30: #{tpu_custom_call.1} parent=1 // pred_check
      _
    $region31: #{tpu_custom_call.1} parent=1 // pred_check_branch
      %31 = sbr.rel (0) target = $region33
    $region32: #{tpu_custom_call.1} parent=1 // pred_region
      _
    $region33: #{tpu_custom_call.1} parent=1 // pred_fallthru
      _
    // Predicated region
    $region34: #{tpu_custom_call.1} parent=1 // pred_check
      _
    $region35: #{tpu_custom_call.1} parent=1 // pred_check_branch
      %33 = sbr.rel (0) target = $region37
    $region36: #{tpu_custom_call.1} parent=1 // pred_region
      _
    $region37: #{tpu_custom_call.1} parent=1 // pred_fallthru
      _
    %v35 = vld [vmem:[%s7] sm:$0x1]
    %v36 = vld [vmem:[%s7 + $0x1] sm:$0x1]
    %v37 = vld [vmem:[%s7 + $0x2] sm:$0x1]
    %v38 = vld [vmem:[%s7 + $0x3] sm:$0x1]
    %v39 = vld [vmem:[%s7 + $0x4] sm:$0x1]
    %v40 = vld [vmem:[%s0] sm:$0xff]
    %v41 = vld [vmem:[%s0 + $0x8] sm:$0xff]
    %v42 = vld [vmem:[%s0 + $0x10] sm:$0xff]
    %v43 = vld [vmem:[%s0 + $0x18] sm:$0xff]
    %v44 = vld [vmem:[%s0 + $0x20] sm:$0xff]
    %v45 = vld [vmem:[%s0 + $0x28] sm:$0xff]
    %v46 = vld [vmem:[%s0 + $0x30] sm:$0xff]
    %v47 = vld [vmem:[%s0 + $0x38] sm:$0xff]
    %v48 = vpack.c.bf16 %v41, %v40
    %v49 = vpack.c.bf16 %v43, %v42
    %v50 = vpack.c.bf16 %v45, %v44
    %v51 = vpack.c.bf16 %v47, %v46
    %v52 = vld [vmem:[%s2] sm:$0xf]
    %v53 = vld [vmem:[%s2 + $0x4] sm:$0xf]
    %v54 = vlaneseq
    %v55 = vshrl.u32 %v54, 7
    %v56 = vsub.s32 0, %v55
    %v57 = vrot.slane %v35, %v56
    %v60 = vunpack.c.l.b16 %v52
    %v61 = vunpack.c.l.b16 %v53
    %v62 = vpack.c.b16 %v61, %v60
    %vm64 = vcmask 130048
    %v66 = vsel %vm64, %v48, 0
    %v69 = vsel %vm64, %v49, 0
    %v72 = vsel %vm64, %v50, 0
    %v75 = vsel %vm64, %v51, 0
    %77 = vmatprep.subr.bf16.mxu0 0
    %78 = vmatpush1.bf16.msra.mxu0 0
    %79 = vmatprep.subr.bf16.mxu0 0
    %80 = vmatpush1.bf16.msra.mxu0 0
    %81 = vmatprep.subr.bf16.mxu0 0
    %82 = vmatpush1.bf16.msra.mxu0 0
    %83 = vmatprep.subr.bf16.mxu0 0
    %84 = vmatpush1.bf16.msra.mxu0 0
    %85 = vmatprep.subr.bf16.mxu0 0
    %86 = vmatpush1.bf16.msra.mxu0 0
    %87 = vmatprep.subr.bf16.mxu0 0
    %88 = vmatpush1.bf16.msra.mxu0 0
    %89 = vmatprep.subr.bf16.mxu0 0
    %90 = vmatpush1.bf16.msra.mxu0 0
    %91 = vmatprep.subr.bf16.mxu0 0
    %92 = vmatpush1.bf16.msra.mxu0 %v62
    %93 = vmatprep.subr.bf16.mxu0 0
    %94 = vmatpush2.bf16.msra.mxu0 0
    %95 = vmatprep.subr.bf16.mxu0 0
    %96 = vmatpush2.bf16.msra.mxu0 0
    %97 = vmatprep.subr.bf16.mxu0 0
    %98 = vmatpush2.bf16.msra.mxu0 0
    %99 = vmatprep.subr.bf16.mxu0 0
    %100 = vmatpush2.bf16.msra.mxu0 0
    %101 = vmatprep.subr.bf16.mxu0 0
    %102 = vmatpush2.bf16.msra.mxu0 0
    %103 = vmatprep.subr.bf16.mxu0 0
    %104 = vmatpush2.bf16.msra.mxu0 0
    %105 = vmatprep.subr.bf16.mxu0 0
    %106 = vmatpush2.bf16.msra.mxu0 0
    %107 = vmatprep.subr.bf16.mxu0 0
    %108 = vmatpush2.bf16.msra.mxu0 0
    %109 = vmatprep.mubr.bf16.mxu0 0
    %110 = vmatmul.mubr.bf16.gmra.mxu0 %v66
    %v111 = vpop.f32.mrf.mxu0
    %v112 = vadd.f32 %v57, %v111
    %v113 = vpop.f32.mrf.mxu0
    %v114 = vpop.f32.mrf.mxu0
    %v115 = vadd.f32 %v57, %v114
    %v116 = vpop.f32.mrf.mxu0
    %117 = vmatprep.mubr.bf16.mxu0 0
    %118 = vmatmul.mubr.bf16.gmra.mxu0 %v69
    %v119 = vpop.f32.mrf.mxu0
    %v120 = vadd.f32 %v57, %v119
    %v121 = vpop.f32.mrf.mxu0
    %v122 = vpop.f32.mrf.mxu0
    %v123 = vadd.f32 %v57, %v122
    %v124 = vpop.f32.mrf.mxu0
    %125 = vmatprep.mubr.bf16.mxu0 0
    %126 = vmatmul.mubr.bf16.gmra.mxu0 %v72
    %v127 = vpop.f32.mrf.mxu0
    %v128 = vadd.f32 %v57, %v127
    %v129 = vpop.f32.mrf.mxu0
    %v130 = vpop.f32.mrf.mxu0
    %v131 = vadd.f32 %v57, %v130
    %v132 = vpop.f32.mrf.mxu0
    %133 = vmatprep.mubr.bf16.mxu0 0
    %134 = vmatmul.mubr.bf16.gmra.mxu0 %v75
    %v135 = vpop.f32.mrf.mxu0
    %v136 = vadd.f32 %v57, %v135
    %v137 = vpop.f32.mrf.mxu0
    %v138 = vpop.f32.mrf.mxu0
    %v139 = vadd.f32 %v57, %v138
    %v140 = vpop.f32.mrf.mxu0
    %141 = vdwg.mxu0
    %vm142 = vcmask 261120
    %v143 = vsel %vm142, %v112, 0.0
    %144 = vadd.xlane.f32.xlu0 %v143
    %v145 = vpop.xlane.xlu0 %144
    %v146 = vsel %vm142, %v115, 0.0
    %147 = vadd.xlane.f32.xlu0 %v146
    %v148 = vpop.xlane.xlu0 %147
    %v149 = vsel %vm142, %v120, 0.0
    %150 = vadd.xlane.f32.xlu0 %v149
    %v151 = vpop.xlane.xlu0 %150
    %v152 = vsel %vm142, %v123, 0.0
    %153 = vadd.xlane.f32.xlu0 %v152
    %v154 = vpop.xlane.xlu0 %153
    %v155 = vsel %vm142, %v128, 0.0
    %156 = vadd.xlane.f32.xlu0 %v155
    %v157 = vpop.xlane.xlu0 %156
    %v158 = vsel %vm142, %v131, 0.0
    %159 = vadd.xlane.f32.xlu0 %v158
    %v160 = vpop.xlane.xlu0 %159
    %v161 = vsel %vm142, %v136, 0.0
    %162 = vadd.xlane.f32.xlu0 %v161
    %v163 = vpop.xlane.xlu0 %162
    %v164 = vsel %vm142, %v139, 0.0
    %165 = vadd.xlane.f32.xlu0 %v164
    %v166 = vpop.xlane.xlu0 %165
    %v167 = vmul.f32 %v112, %v112
    %v168 = vmul.f32 %v115, %v115
    %v169 = vmul.f32 %v120, %v120
    %v170 = vmul.f32 %v123, %v123
    %v171 = vmul.f32 %v128, %v128
    %v172 = vmul.f32 %v131, %v131
    %v173 = vmul.f32 %v136, %v136
    %v174 = vmul.f32 %v139, %v139
    %v175 = vsel %vm142, %v167, 0.0
    %176 = vadd.xlane.f32.xlu0 %v175
    %v177 = vpop.xlane.xlu0 %176
    %v178 = vsel %vm142, %v168, 0.0
    %179 = vadd.xlane.f32.xlu0 %v178
    %v180 = vpop.xlane.xlu0 %179
    %v181 = vsel %vm142, %v169, 0.0
    %182 = vadd.xlane.f32.xlu0 %v181
    %v183 = vpop.xlane.xlu0 %182
    %v184 = vsel %vm142, %v170, 0.0
    %185 = vadd.xlane.f32.xlu0 %v184
    %v186 = vpop.xlane.xlu0 %185
    %v187 = vsel %vm142, %v171, 0.0
    %188 = vadd.xlane.f32.xlu0 %v187
    %v189 = vpop.xlane.xlu0 %188
    %v190 = vsel %vm142, %v172, 0.0
    %191 = vadd.xlane.f32.xlu0 %v190
    %v192 = vpop.xlane.xlu0 %191
    %v193 = vsel %vm142, %v173, 0.0
    %194 = vadd.xlane.f32.xlu0 %v193
    %v195 = vpop.xlane.xlu0 %194
    %v196 = vsel %vm142, %v174, 0.0
    %197 = vadd.xlane.f32.xlu0 %v196
    %v198 = vpop.xlane.xlu0 %197
    %v199 = vmul.f32 %v145, 0.03125
    %v200 = vmul.f32 %v148, 0.03125
    %v201 = vmul.f32 %v151, 0.03125
    %v202 = vmul.f32 %v154, 0.03125
    %v203 = vmul.f32 %v157, 0.03125
    %v204 = vmul.f32 %v160, 0.03125
    %v205 = vmul.f32 %v163, 0.03125
    %v206 = vmul.f32 %v166, 0.03125
    %v207 = vmul.f32 %v177, 0.03125
    %v208 = vmul.f32 %v180, 0.03125
    %v209 = vmul.f32 %v183, 0.03125
    %v210 = vmul.f32 %v186, 0.03125
    %v211 = vmul.f32 %v189, 0.03125
    %v212 = vmul.f32 %v192, 0.03125
    %v213 = vmul.f32 %v195, 0.03125
    %v214 = vmul.f32 %v198, 0.03125
    %v215 = vmul.f32 %v199, %v199
    %v216 = vmul.f32 %v200, %v200
    %v217 = vmul.f32 %v201, %v201
    %v218 = vmul.f32 %v202, %v202
    %v219 = vmul.f32 %v203, %v203
    %v220 = vmul.f32 %v204, %v204
    %v221 = vmul.f32 %v205, %v205
    %v222 = vmul.f32 %v206, %v206
    %v223 = vsub.f32 %v207, %v215
    %v224 = vsub.f32 %v208, %v216
    %v225 = vsub.f32 %v209, %v217
    %v226 = vsub.f32 %v210, %v218
    %v227 = vsub.f32 %v211, %v219
    %v228 = vsub.f32 %v212, %v220
    %v229 = vsub.f32 %v213, %v221
    %v230 = vsub.f32 %v214, %v222
    %v231 = vmax.f32 %v223, 0.0
    %v232 = vmax.f32 %v224, 0.0
    %v233 = vmax.f32 %v225, 0.0
    %v234 = vmax.f32 %v226, 0.0
    %v235 = vmax.f32 %v227, 0.0
    %v236 = vmax.f32 %v228, 0.0
    %v237 = vmax.f32 %v229, 0.0
    %v238 = vmax.f32 %v230, 0.0
    %v239 = vsub.f32 %v112, %v199
    %v240 = vsub.f32 %v115, %v200
    %v241 = vsub.f32 %v120, %v201
    %v242 = vsub.f32 %v123, %v202
    %v243 = vsub.f32 %v128, %v203
    %v244 = vsub.f32 %v131, %v204
    %v245 = vsub.f32 %v136, %v205
    %v246 = vsub.f32 %v139, %v206
    %v247 = vadd.f32 %v231, 1e-05
    %v248 = vadd.f32 %v232, 1e-05
    %v249 = vadd.f32 %v233, 1e-05
    %v250 = vadd.f32 %v234, 1e-05
    %v251 = vadd.f32 %v235, 1e-05
    %v252 = vadd.f32 %v236, 1e-05
    %v253 = vadd.f32 %v237, 1e-05
    %v254 = vadd.f32 %v238, 1e-05
    %v255 = vrsqrt.pop %v247
    %v256 = vrsqrt.pop %v248
    %v257 = vrsqrt.pop %v249
    %v258 = vrsqrt.pop %v250
    %v259 = vrsqrt.pop %v251
    %v260 = vrsqrt.pop %v252
    %v261 = vrsqrt.pop %v253
    %v262 = vrsqrt.pop %v254
    %v263 = vmul.f32 %v239, %v255
    %v264 = vmul.f32 %v240, %v256
    %v265 = vmul.f32 %v241, %v257
    %v266 = vmul.f32 %v242, %v258
    %v267 = vmul.f32 %v243, %v259
    %v268 = vmul.f32 %v244, %v260
    %v269 = vmul.f32 %v245, %v261
    %v270 = vmul.f32 %v246, %v262
    %v271 = vlaneseq
    %v272 = vshrl.u32 %v271, 7
    %v273 = vsub.s32 0, %v272
    %v274 = vrot.slane %v36, %v273
    %v275 = vmul.f32 %v263, %v274
    %v276 = vmul.f32 %v264, %v274
    %v277 = vmul.f32 %v265, %v274
    %v278 = vmul.f32 %v266, %v274
    %v279 = vmul.f32 %v267, %v274
    %v280 = vmul.f32 %v268, %v274
    %v281 = vmul.f32 %v269, %v274
    %v282 = vmul.f32 %v270, %v274
    %v283 = vlaneseq
    %v284 = vshrl.u32 %v283, 7
    %v285 = vsub.s32 0, %v284
    %v286 = vrot.slane %v37, %v285
    %v287 = vadd.f32 %v275, %v286
    %v288 = vadd.f32 %v276, %v286
    %v289 = vadd.f32 %v277, %v286
    %v290 = vadd.f32 %v278, %v286
    %v291 = vadd.f32 %v279, %v286
    %v292 = vadd.f32 %v280, %v286
    %v293 = vadd.f32 %v281, %v286
    %v294 = vadd.f32 %v282, %v286
    %v295 = vmul.f32 %v287, 0.01
    %v296 = vmul.f32 %v288, 0.01
    %v297 = vmul.f32 %v289, 0.01
    %v298 = vmul.f32 %v290, 0.01
    %v299 = vmul.f32 %v291, 0.01
    %v300 = vmul.f32 %v292, 0.01
    %v301 = vmul.f32 %v293, 0.01
    %v302 = vmul.f32 %v294, 0.01
    %v303 = vmax.f32 %v287, %v295
    %v304 = vmax.f32 %v288, %v296
    %v305 = vmax.f32 %v289, %v297
    %v306 = vmax.f32 %v290, %v298
    %v307 = vmax.f32 %v291, %v299
    %v308 = vmax.f32 %v292, %v300
    %v309 = vmax.f32 %v293, %v301
    %v310 = vmax.f32 %v294, %v302
    %v311 = vpack.c.bf16 %v304, %v303
    %v312 = vpack.c.bf16 %v306, %v305
    %v313 = vpack.c.bf16 %v308, %v307
    %v314 = vpack.c.bf16 %v310, %v309
    %v315 = vld [vmem:[%s3] sm:$0xf]
    %v316 = vld [vmem:[%s3 + $0x4] sm:$0xf]
    %v317 = vld [vmem:[%s3 + $0x8] sm:$0xf]
    %v318 = vld [vmem:[%s3 + $0xc] sm:$0xf]
    %v319 = vld [vmem:[%s1] sm:$0xff]
    %v320 = vld [vmem:[%s1 + $0x8] sm:$0xff]
    %v321 = vld [vmem:[%s1 + $0x10] sm:$0xff]
    %v322 = vld [vmem:[%s1 + $0x18] sm:$0xff]
    %v323 = vld [vmem:[%s1 + $0x20] sm:$0xff]
    %v324 = vld [vmem:[%s1 + $0x28] sm:$0xff]
    %v325 = vld [vmem:[%s1 + $0x30] sm:$0xff]
    %v326 = vld [vmem:[%s1 + $0x38] sm:$0xff]
    %v327 = vpack.c.bf16 %v320, %v319
    %v328 = vpack.c.bf16 %v322, %v321
    %v329 = vpack.c.bf16 %v324, %v323
    %v330 = vpack.c.bf16 %v326, %v325
    %v331 = vld [vmem:[%s4] sm:$0xf]
    %vm332 = vcmask 64512
    %v334 = vsel %vm332, %v327, 0
    %v337 = vsel %vm332, %v328, 0
    %v340 = vsel %vm332, %v329, 0
    %v343 = vsel %vm332, %v330, 0
    %vm345 = vcmask 1043456
    %v347 = vsel %vm345, %v331, 0
    %349 = vmatprep.subr.bf16.mxu0 0
    %350 = vmatpush1.bf16.msra.mxu0 0
    %351 = vmatprep.subr.bf16.mxu0 0
    %352 = vmatpush1.bf16.msra.mxu0 0
    %353 = vmatprep.subr.bf16.mxu0 0
    %354 = vmatpush1.bf16.msra.mxu0 0
    %355 = vmatprep.subr.bf16.mxu0 0
    %356 = vmatpush1.bf16.msra.mxu0 0
    %357 = vmatprep.subr.bf16.mxu0 0
    %358 = vmatpush1.bf16.msra.mxu0 0
    %359 = vmatprep.subr.bf16.mxu0 0
    %360 = vmatpush1.bf16.msra.mxu0 0
    %361 = vmatprep.subr.bf16.mxu0 0
    %362 = vmatpush1.bf16.msra.mxu0 0
    %363 = vmatprep.subr.bf16.mxu0 0
    %364 = vmatpush1.bf16.msra.mxu0 %v347
    %365 = vmatprep.subr.bf16.mxu0 0
    %366 = vmatpush2.bf16.msra.mxu0 0
    %367 = vmatprep.subr.bf16.mxu0 0
    %368 = vmatpush2.bf16.msra.mxu0 0
    %369 = vmatprep.subr.bf16.mxu0 0
    %370 = vmatpush2.bf16.msra.mxu0 0
    %371 = vmatprep.subr.bf16.mxu0 0
    %372 = vmatpush2.bf16.msra.mxu0 0
    %373 = vmatprep.subr.bf16.mxu0 0
    %374 = vmatpush2.bf16.msra.mxu0 0
    %375 = vmatprep.subr.bf16.mxu0 0
    %376 = vmatpush2.bf16.msra.mxu0 0
    %377 = vmatprep.subr.bf16.mxu0 0
    %378 = vmatpush2.bf16.msra.mxu0 0
    %379 = vmatprep.subr.bf16.mxu0 0
    %380 = vmatpush2.bf16.msra.mxu0 0
    %381 = vmatprep.mubr.bf16.mxu0 0
    %382 = vmatmul.mubr.bf16.gmra.mxu0 %v334
    %v383 = vpop.f32.mrf.mxu0
    %v384 = vadd.f32 0.0, %v383
    %v385 = vpop.f32.mrf.mxu0
    %v386 = vpop.f32.mrf.mxu0
    %v387 = vadd.f32 0.0, %v386
    %v388 = vpop.f32.mrf.mxu0
    %389 = vmatprep.mubr.bf16.mxu0 0
    %390 = vmatmul.mubr.bf16.gmra.mxu0 %v337
    %v391 = vpop.f32.mrf.mxu0
    %v392 = vadd.f32 0.0, %v391
    %v393 = vpop.f32.mrf.mxu0
    %v394 = vpop.f32.mrf.mxu0
    %v395 = vadd.f32 0.0, %v394
    %v396 = vpop.f32.mrf.mxu0
    %397 = vmatprep.mubr.bf16.mxu0 0
    %398 = vmatmul.mubr.bf16.gmra.mxu0 %v340
    %v399 = vpop.f32.mrf.mxu0
    %v400 = vadd.f32 0.0, %v399
    %v401 = vpop.f32.mrf.mxu0
    %v402 = vpop.f32.mrf.mxu0
    %v403 = vadd.f32 0.0, %v402
    %v404 = vpop.f32.mrf.mxu0
    %405 = vmatprep.mubr.bf16.mxu0 0
    %406 = vmatmul.mubr.bf16.gmra.mxu0 %v343
    %v407 = vpop.f32.mrf.mxu0
    %v408 = vadd.f32 0.0, %v407
    %v409 = vpop.f32.mrf.mxu0
    %v410 = vpop.f32.mrf.mxu0
    %v411 = vadd.f32 0.0, %v410
    %v412 = vpop.f32.mrf.mxu0
    %413 = vdwg.mxu0
    %v418 = vunpack.c.l.b16 %v315
    %v419 = vunpack.c.l.b16 %v316
    %v420 = vunpack.c.l.b16 %v317
    %v421 = vunpack.c.l.b16 %v318
    %v422 = vpack.c.b16 %v419, %v418
    %v423 = vpack.c.b16 %v421, %v420
    %v427 = vsel %vm142, %v311, 0
    %v430 = vsel %vm142, %v312, 0
    %v433 = vsel %vm142, %v313, 0
    %v436 = vsel %vm142, %v314, 0
    %438 = vmatprep.subr.bf16.mxu0 0
    %439 = vmatpush1.bf16.msra.mxu0 0
    %440 = vmatprep.subr.bf16.mxu0 0
    %441 = vmatpush1.bf16.msra.mxu0 0
    %442 = vmatprep.subr.bf16.mxu0 0
    %443 = vmatpush1.bf16.msra.mxu0 0
    %444 = vmatprep.subr.bf16.mxu0 0
    %445 = vmatpush1.bf16.msra.mxu0 0
    %446 = vmatprep.subr.bf16.mxu0 0
    %447 = vmatpush1.bf16.msra.mxu0 0
    %448 = vmatprep.subr.bf16.mxu0 0
    %449 = vmatpush1.bf16.msra.mxu0 0
    %450 = vmatprep.subr.bf16.mxu0 0
    %451 = vmatpush1.bf16.msra.mxu0 %v423
    %452 = vmatprep.subr.bf16.mxu0 0
    %453 = vmatpush1.bf16.msra.mxu0 %v422
    %454 = vmatprep.subr.bf16.mxu0 0
    %455 = vmatpush2.bf16.msra.mxu0 0
    %456 = vmatprep.subr.bf16.mxu0 0
    %457 = vmatpush2.bf16.msra.mxu0 0
    %458 = vmatprep.subr.bf16.mxu0 0
    %459 = vmatpush2.bf16.msra.mxu0 0
    %460 = vmatprep.subr.bf16.mxu0 0
    %461 = vmatpush2.bf16.msra.mxu0 0
    %462 = vmatprep.subr.bf16.mxu0 0
    %463 = vmatpush2.bf16.msra.mxu0 0
    %464 = vmatprep.subr.bf16.mxu0 0
    %465 = vmatpush2.bf16.msra.mxu0 0
    %466 = vmatprep.subr.bf16.mxu0 0
    %467 = vmatpush2.bf16.msra.mxu0 0
    %468 = vmatprep.subr.bf16.mxu0 0
    %469 = vmatpush2.bf16.msra.mxu0 0
    %470 = vmatprep.mubr.bf16.mxu0 0
    %471 = vmatmul.mubr.bf16.gmra.mxu0 %v427
    %v472 = vpop.f32.mrf.mxu0
    %v473 = vadd.f32 %v384, %v472
    %v474 = vpop.f32.mrf.mxu0
    %v475 = vpop.f32.mrf.mxu0
    %v476 = vadd.f32 %v387, %v475
    %v477 = vpop.f32.mrf.mxu0
    %478 = vmatprep.mubr.bf16.mxu0 0
    %479 = vmatmul.mubr.bf16.gmra.mxu0 %v430
    %v480 = vpop.f32.mrf.mxu0
    %v481 = vadd.f32 %v392, %v480
    %v482 = vpop.f32.mrf.mxu0
    %v483 = vpop.f32.mrf.mxu0
    %v484 = vadd.f32 %v395, %v483
    %v485 = vpop.f32.mrf.mxu0
    %486 = vmatprep.mubr.bf16.mxu0 0
    %487 = vmatmul.mubr.bf16.gmra.mxu0 %v433
    %v488 = vpop.f32.mrf.mxu0
    %v489 = vadd.f32 %v400, %v488
    %v490 = vpop.f32.mrf.mxu0
    %v491 = vpop.f32.mrf.mxu0
    %v492 = vadd.f32 %v403, %v491
    %v493 = vpop.f32.mrf.mxu0
    %494 = vmatprep.mubr.bf16.mxu0 0
    %495 = vmatmul.mubr.bf16.gmra.mxu0 %v436
    %v496 = vpop.f32.mrf.mxu0
    %v497 = vadd.f32 %v408, %v496
    %v498 = vpop.f32.mrf.mxu0
    %v499 = vpop.f32.mrf.mxu0
    %v500 = vadd.f32 %v411, %v499
    %v501 = vpop.f32.mrf.mxu0
    %502 = vdwg.mxu0
    %v503 = vlaneseq
    %v504 = vshrl.u32 %v503, 7
    %v505 = vsub.s32 0, %v504
    %v506 = vrot.slane %v38, %v505
    %v507 = vadd.f32 %v473, %v506
    %v508 = vadd.f32 %v476, %v506
    %v509 = vadd.f32 %v481, %v506
    %v510 = vadd.f32 %v484, %v506
    %v511 = vadd.f32 %v489, %v506
    %v512 = vadd.f32 %v492, %v506
    %v513 = vadd.f32 %v497, %v506
    %v514 = vadd.f32 %v500, %v506
    %v515 = vmul.f32 %v507, 0.01
    %v516 = vmul.f32 %v508, 0.01
    %v517 = vmul.f32 %v509, 0.01
    %v518 = vmul.f32 %v510, 0.01
    %v519 = vmul.f32 %v511, 0.01
    %v520 = vmul.f32 %v512, 0.01
    %v521 = vmul.f32 %v513, 0.01
    %v522 = vmul.f32 %v514, 0.01
    %v523 = vmax.f32 %v507, %v515
    %v524 = vmax.f32 %v508, %v516
    %v525 = vmax.f32 %v509, %v517
    %v526 = vmax.f32 %v510, %v518
    %v527 = vmax.f32 %v511, %v519
    %v528 = vmax.f32 %v512, %v520
    %v529 = vmax.f32 %v513, %v521
    %v530 = vmax.f32 %v514, %v522
    %v531 = vpack.c.bf16 %v524, %v523
    %v532 = vpack.c.bf16 %v526, %v525
    %v533 = vpack.c.bf16 %v528, %v527
    %v534 = vpack.c.bf16 %v530, %v529
    %v535 = vld [vmem:[%s5] sm:$0xf]
    %v536 = vld [vmem:[%s5 + $0x4] sm:$0xf]
    %v537 = vld [vmem:[%s5 + $0x8] sm:$0xf]
    %v538 = vld [vmem:[%s5 + $0xc] sm:$0xf]
    %v539 = vlaneseq
    %v540 = vshrl.u32 %v539, 7
    %v541 = vsub.s32 0, %v540
    %v542 = vrot.slane %v39, %v541
    %v547 = vunpack.c.l.b16 %v535
    %v548 = vunpack.c.l.b16 %v536
    %v549 = vunpack.c.l.b16 %v537
    %v550 = vunpack.c.l.b16 %v538
    %v551 = vpack.c.b16 %v548, %v547
    %v552 = vpack.c.b16 %v550, %v549
    %v556 = vsel %vm142, %v531, 0
    %v559 = vsel %vm142, %v532, 0
    %v562 = vsel %vm142, %v533, 0
    %v565 = vsel %vm142, %v534, 0
    %567 = vmatprep.subr.bf16.mxu0 0
    %568 = vmatpush1.bf16.msra.mxu0 0
    %569 = vmatprep.subr.bf16.mxu0 0
    %570 = vmatpush1.bf16.msra.mxu0 0
    %571 = vmatprep.subr.bf16.mxu0 0
    %572 = vmatpush1.bf16.msra.mxu0 0
    %573 = vmatprep.subr.bf16.mxu0 0
    %574 = vmatpush1.bf16.msra.mxu0 0
    %575 = vmatprep.subr.bf16.mxu0 0
    %576 = vmatpush1.bf16.msra.mxu0 0
    %577 = vmatprep.subr.bf16.mxu0 0
    %578 = vmatpush1.bf16.msra.mxu0 0
    %579 = vmatprep.subr.bf16.mxu0 0
    %580 = vmatpush1.bf16.msra.mxu0 %v552
    %581 = vmatprep.subr.bf16.mxu0 0
    %582 = vmatpush1.bf16.msra.mxu0 %v551
    %583 = vmatprep.subr.bf16.mxu0 0
    %584 = vmatpush2.bf16.msra.mxu0 0
    %585 = vmatprep.subr.bf16.mxu0 0
    %586 = vmatpush2.bf16.msra.mxu0 0
    %587 = vmatprep.subr.bf16.mxu0 0
    %588 = vmatpush2.bf16.msra.mxu0 0
    %589 = vmatprep.subr.bf16.mxu0 0
    %590 = vmatpush2.bf16.msra.mxu0 0
    %591 = vmatprep.subr.bf16.mxu0 0
    %592 = vmatpush2.bf16.msra.mxu0 0
    %593 = vmatprep.subr.bf16.mxu0 0
    %594 = vmatpush2.bf16.msra.mxu0 0
    %595 = vmatprep.subr.bf16.mxu0 0
    %596 = vmatpush2.bf16.msra.mxu0 0
    %597 = vmatprep.subr.bf16.mxu0 0
    %598 = vmatpush2.bf16.msra.mxu0 0
    %599 = vmatprep.mubr.bf16.mxu0 0
    %600 = vmatmul.mubr.bf16.gmra.mxu0 %v556
    %v601 = vpop.f32.mrf.mxu0
    %v602 = vadd.f32 %v542, %v601
    %v603 = vpop.f32.mrf.mxu0
    %v604 = vpop.f32.mrf.mxu0
    %v605 = vadd.f32 %v542, %v604
    %v606 = vpop.f32.mrf.mxu0
    %607 = vmatprep.mubr.bf16.mxu0 0
    %608 = vmatmul.mubr.bf16.gmra.mxu0 %v559
    %v609 = vpop.f32.mrf.mxu0
    %v610 = vadd.f32 %v542, %v609
    %v611 = vpop.f32.mrf.mxu0
    %v612 = vpop.f32.mrf.mxu0
    %v613 = vadd.f32 %v542, %v612
    %v614 = vpop.f32.mrf.mxu0
    %615 = vmatprep.mubr.bf16.mxu0 0
    %616 = vmatmul.mubr.bf16.gmra.mxu0 %v562
    %v617 = vpop.f32.mrf.mxu0
    %v618 = vadd.f32 %v542, %v617
    %v619 = vpop.f32.mrf.mxu0
    %v620 = vpop.f32.mrf.mxu0
    %v621 = vadd.f32 %v542, %v620
    %v622 = vpop.f32.mrf.mxu0
    %623 = vmatprep.mubr.bf16.mxu0 0
    %624 = vmatmul.mubr.bf16.gmra.mxu0 %v565
    %v625 = vpop.f32.mrf.mxu0
    %v626 = vadd.f32 %v542, %v625
    %v627 = vpop.f32.mrf.mxu0
    %v628 = vpop.f32.mrf.mxu0
    %v629 = vadd.f32 %v542, %v628
    %v630 = vpop.f32.mrf.mxu0
    %631 = vdwg.mxu0
    %v632 = vmul.f32 %v602, 0.01
    %v633 = vmul.f32 %v605, 0.01
    %v634 = vmul.f32 %v610, 0.01
    %v635 = vmul.f32 %v613, 0.01
    %v636 = vmul.f32 %v618, 0.01
    %v637 = vmul.f32 %v621, 0.01
    %v638 = vmul.f32 %v626, 0.01
    %v639 = vmul.f32 %v629, 0.01
    %v640 = vmax.f32 %v602, %v632
    %v641 = vmax.f32 %v605, %v633
    %v642 = vmax.f32 %v610, %v634
    %v643 = vmax.f32 %v613, %v635
    %v644 = vmax.f32 %v618, %v636
    %v645 = vmax.f32 %v621, %v637
    %v646 = vmax.f32 %v626, %v638
    %v647 = vmax.f32 %v629, %v639
    %v648 = vld [vmem:[%s6] sm:$0x1]
    %v650 = vlaneseq
    %v651 = vshrl.u32 %v650, 7
    %v652 = vsub.s32 0, %v651
    %v653 = vrot.slane %v648, %v652
    %v655 = vmul.f32 %v640, %v653
    %v656 = vmul.f32 %v641, %v653
    %v657 = vmul.f32 %v642, %v653
    %v658 = vmul.f32 %v643, %v653
    %v659 = vmul.f32 %v644, %v653
    %v660 = vmul.f32 %v645, %v653
    %v661 = vmul.f32 %v646, %v653
    %v662 = vmul.f32 %v647, %v653
    %v663 = vsel %vm142, %v655, 0.0
    %664 = vadd.xlane.f32.xlu0 %v663
    %v665 = vpop.xlane.xlu0 %664
    %v666 = vsel %vm142, %v656, 0.0
    %667 = vadd.xlane.f32.xlu0 %v666
    %v668 = vpop.xlane.xlu0 %667
    %v669 = vsel %vm142, %v657, 0.0
    %670 = vadd.xlane.f32.xlu0 %v669
    %v671 = vpop.xlane.xlu0 %670
    %v672 = vsel %vm142, %v658, 0.0
    %673 = vadd.xlane.f32.xlu0 %v672
    %v674 = vpop.xlane.xlu0 %673
    %v675 = vsel %vm142, %v659, 0.0
    %676 = vadd.xlane.f32.xlu0 %v675
    %v677 = vpop.xlane.xlu0 %676
    %v678 = vsel %vm142, %v660, 0.0
    %679 = vadd.xlane.f32.xlu0 %v678
    %v680 = vpop.xlane.xlu0 %679
    %v681 = vsel %vm142, %v661, 0.0
    %682 = vadd.xlane.f32.xlu0 %v681
    %v683 = vpop.xlane.xlu0 %682
    %v684 = vsel %vm142, %v662, 0.0
    %685 = vadd.xlane.f32.xlu0 %v684
    %v686 = vpop.xlane.xlu0 %685
    %s687 = sld [smem:[#allocation2]]
    %v688 = vstv %s687
    %v689 = vadd.f32 %v665, %v688
    %v690 = vadd.f32 %v668, %v688
    %v691 = vadd.f32 %v671, %v688
    %v692 = vadd.f32 %v674, %v688
    %v693 = vadd.f32 %v677, %v688
    %v694 = vadd.f32 %v680, %v688
    %v695 = vadd.f32 %v683, %v688
    %v696 = vadd.f32 %v686, %v688
    %v705 = vlaneseq
    %v706 = vand.u32 %v705, 127
    %v707 = vlaneseq
    %v708 = vshrl.u32 %v707, 7
    %v709 = vsub.s32 %v706, %v708
    %v710 = vrot.slane %v689, %v709
    %v711 = vadd.s32 %v706, 4294967288
    %v712 = vlaneseq
    %v713 = vshrl.u32 %v712, 7
    %v714 = vsub.s32 %v711, %v713
    %v715 = vrot.slane %v690, %v714
    %vm716 = vcmask 130112
    %v717 = vsel %vm716, %v715, %v710
    %v718 = vadd.s32 %v706, 4294967280
    %v719 = vlaneseq
    %v720 = vshrl.u32 %v719, 7
    %v721 = vsub.s32 %v718, %v720
    %v722 = vrot.slane %v691, %v721
    %vm723 = vcmask 195712
    %v724 = vsel %vm723, %v722, %v717
    %v725 = vadd.s32 %v706, 4294967272
    %v726 = vlaneseq
    %v727 = vshrl.u32 %v726, 7
    %v728 = vsub.s32 %v725, %v727
    %v729 = vrot.slane %v692, %v728
    %vm730 = vcmask 261312
    %v731 = vsel %vm730, %v729, %v724
    %v732 = vadd.s32 %v706, 4294967264
    %v733 = vlaneseq
    %v734 = vshrl.u32 %v733, 7
    %v735 = vsub.s32 %v732, %v734
    %v736 = vrot.slane %v693, %v735
    %vm737 = vcmask 326912
    %v738 = vsel %vm737, %v736, %v731
    %v739 = vadd.s32 %v706, 4294967256
    %v740 = vlaneseq
    %v741 = vshrl.u32 %v740, 7
    %v742 = vsub.s32 %v739, %v741
    %v743 = vrot.slane %v694, %v742
    %vm744 = vcmask 392512
    %v745 = vsel %vm744, %v743, %v738
    %v746 = vadd.s32 %v706, 4294967248
    %v747 = vlaneseq
    %v748 = vshrl.u32 %v747, 7
    %v749 = vsub.s32 %v746, %v748
    %v750 = vrot.slane %v695, %v749
    %vm751 = vcmask 458112
    %v752 = vsel %vm751, %v750, %v745
    %v753 = vadd.s32 %v706, 4294967240
    %v754 = vlaneseq
    %v755 = vshrl.u32 %v754, 7
    %v756 = vsub.s32 %v753, %v755
    %v757 = vrot.slane %v696, %v756
    %vm758 = vcmask 523712
    %v759 = vsel %vm758, %v757, %v752
    %vm761 = vcmask 516096
    %762 = vst.msk [vmem:[#allocation3] sm:$0x1] %vm761, %v759
    // Predicated region
    $region38: #{tpu_custom_call.1} parent=1 // pred_check
      _
    $region39: #{tpu_custom_call.1} parent=1 // pred_check_branch
      %764 = sbr.rel (0) target = $region41
    $region40: #{tpu_custom_call.1} parent=1 // pred_region
      %s766 = ssub.s32 16, 16
      %767 = vsyncadd [#allocation4], %s766
      %s769 = sshll.u32 [#allocation3], 4
      %s770 = int_to_ptr.vmem [resolvable:$true] %s769
      %772 = dma.vmem_to_hbm [thread:$0]  %s770, 16, %s9, [#allocation4]
    $region41: #{tpu_custom_call.1} parent=1 // pred_fallthru
      _
    // Predicated region
    $region42: #{tpu_custom_call.1} parent=1 // pred_check
      _
    $region43: #{tpu_custom_call.1} parent=1 // pred_check_branch
      %774 = sbr.rel (0) target = $region45
    $region44: #{tpu_custom_call.1} parent=1 // pred_region
      %775 = dma.done [#allocation4], 16
    $region45: #{tpu_custom_call.1} parent=1 // pred_fallthru
      _
    %776 = vsyncpa [#allocation4], 1

</llo_original>
